<compile_context>
chip_gen: v6e
topology: v6e:2x2x1
jax: 0.10.0
libtpu: 0.0.40
codegen_flags: <defaults>
</compile_context>

<pallas_src>
import jax
import jax.numpy as jnp
from jax.experimental import pallas as pl
from jax.experimental.pallas import tpu as pltpu


def _identity_kernel(x_ref, o_ref):
    # Pure pass-through: copy the resident (tile_m, lane_w) tile.
    o_ref[...] = x_ref[...]


def _pick_lane_width(total):
    # Largest multiple-of-128 last dim that evenly divides the element count.
    for w in (4096, 2048, 1024, 512, 256, 128):
        if total % w == 0:
            return w
    return None


def _materializing_copy(x):
    """Identity implemented as a lane-dense, row-tiled Pallas copy kernel."""
    orig_shape = x.shape
    total = x.size
    lane_w = _pick_lane_width(total)
    if lane_w is None or total == 0:
        # No lane-dense 2D view; a masked-store kernel would be strictly
        # slower than the exact identity, so just return the input.
        return x

    rows = total // lane_w
    x2d = x.reshape(rows, lane_w)

    # Dtype-aware sublane multiple: 8 rows for 32-bit, 16 for 16-bit,
    # 32 for 8-bit dtypes (packed dtypes pack along sublanes).
    itemsize = jnp.dtype(x.dtype).itemsize
    sublane_mult = 8 * max(1, 4 // itemsize)

    # Target ~2 MiB per block: double-buffered in+out = 8 MiB, within every
    # generation's default scoped VMEM (v5e 16 MiB, v6e/v7x 32 MiB).
    target_bytes = 2 * 1024 * 1024
    tile_m = max(1, target_bytes // (lane_w * itemsize))
    tile_m = min(tile_m, rows)
    if rows >= sublane_mult and tile_m >= sublane_mult:
        tile_m -= tile_m % sublane_mult
    else:
        # Fewer rows than one sublane group: block spans the full row extent.
        tile_m = rows
    grid_m = pl.cdiv(rows, tile_m)

    # TODO(synk): for v7x 2-TC sharding of this mem-bound copy, the grid axis
    # would need pltpu.CORE_PARALLEL semantics (plain "parallel" does not
    # shard across TensorCores); kept at "parallel" for portability.
    out2d = pl.pallas_call(
        _identity_kernel,
        out_shape=jax.ShapeDtypeStruct(x2d.shape, x2d.dtype),
        grid_spec=pltpu.PrefetchScalarGridSpec(
            num_scalar_prefetch=0,
            grid=(grid_m,),
            in_specs=[pl.BlockSpec((tile_m, lane_w), lambda i: (i, 0))],
            out_specs=pl.BlockSpec((tile_m, lane_w), lambda i: (i, 0)),
        ),
        compiler_params=pltpu.CompilerParams(
            dimension_semantics=("parallel",),
        ),
        cost_estimate=pl.CostEstimate(
            flops=0, transcendentals=0, bytes_accessed=2 * x2d.nbytes
        ),
    )(x2d)

    return out2d.reshape(orig_shape)


def print_layer(x, materialize=False):
    """Forward pass of PrintLayer: print(x.shape); return x.

    Default path (materialize=False) is the perf-review recommendation:
    zero HBM traffic, zero launches — the op is a pure identity.
    Set materialize=True only if a fresh HBM buffer is explicitly required.
    """
    # Host-side print of the (static) shape, matching `print(x.shape)`.
    # TODO(synk): under jax.jit this fires once per trace, not once per
    # execution; a per-execution runtime print of a shape string has no clean
    # Pallas/TPU equivalent, so the print stays trace-time.
    print(x.shape)

    if not materialize:
        return x
    return _materializing_copy(x)


if __name__ == "__main__":
    key = jax.random.PRNGKey(0)
    # Small NCHW input: batch=2, channels=4, spatial=16x16.
    x = jax.random.normal(key, (2, 4, 16, 16), dtype=jnp.float32)

    # Default (recommended) path: pure identity, no kernel launched.
    y = print_layer(x)
    y = jax.block_until_ready(y)
    assert y.shape == x.shape
    assert y.dtype == x.dtype
    assert bool(jnp.all(y == x))

    # Exercise the Pallas materializing-copy path once to validate the kernel.
    y2 = print_layer(x, materialize=True)
    y2 = jax.block_until_ready(y2)
    assert y2.shape == x.shape
    assert y2.dtype == x.dtype
    assert bool(jnp.all(y2 == x))

    print("KERNEL_OK")
</pallas_src>

<mosaic_0001>
module attributes {stable_mosaic.version = 11 : i64} {
  func.func @_identity_kernel(%arg0: i32, %arg1: memref<1x2048xf32, #tpu.memory_space<vmem>>, %arg2: memref<1x2048xf32, #tpu.memory_space<vmem>>) attributes {dimension_semantics = [#tpu.dimension_semantics<parallel>], iteration_bounds = array<i64: 1>, scalar_prefetch = 0 : i64, scratch_operands = 0 : i64, tpu.core_type = #tpu.core_type<tc>, window_params = [{transform_indices = @transform_0, window_bounds = array<i64: 1, 2048>}, {transform_indices = @transform_1, window_bounds = array<i64: 1, 2048>}]} {
    %c0 = arith.constant 0 : index
    %c0_0 = arith.constant 0 : index
    %0 = vector.load %arg1[%c0, %c0_0] : memref<1x2048xf32, #tpu.memory_space<vmem>>, vector<1x2048xf32>
    %c0_1 = arith.constant 0 : index
    %c0_2 = arith.constant 0 : index
    %1 = vector.load %arg2[%c0_1, %c0_2] : memref<1x2048xf32, #tpu.memory_space<vmem>>, vector<1x2048xf32>
    tpu.vector_store %arg2[%c0_1, %c0_2], %0 {strides = array<i32>} : memref<1x2048xf32, #tpu.memory_space<vmem>>, vector<1x2048xf32>,
    return
  }
  func.func @transform_0(%arg0: i32) -> (i32, i32) {
    %c0_i32 = arith.constant 0 : i32
    %c0_i32_0 = arith.constant 0 : i32
    return %arg0, %c0_i32 : i32, i32
  }
  func.func @transform_1(%arg0: i32) -> (i32, i32) {
    %c0_i32 = arith.constant 0 : i32
    %c0_i32_0 = arith.constant 0 : i32
    return %arg0, %c0_i32 : i32, i32
  }
}

</mosaic_0001>

<llo_original>
// kernel: tpu_custom_call.1
$region0: #{tpu_custom_call.1}
  #allocation0 [shape = 'u32[]', space=smem, size = 0x4, offset = 0x4, fixed_abs, tag = 'smem constant byte address 0x4 - core index']
  #allocation1 [shape = 'u32[144,128]{1,0:T(1,128)}', space=vmem, size = 0x12000, scoped, tag = 'internal scratch']
  %s0 = inlined_call_operand.hbm [shape: f32[1,2048], index: 0, kind: input, shape index: {}]
  %s1 = inlined_call_operand.hbm [shape: f32[1,2048], index: 1, kind: output, shape index: {}]
  %s2 = sld [smem:[#allocation0]]
  $region18: #{tpu_custom_call.1} parent=0
    _
  %s4 = ssub.s32 1, %s2
  %s5 = scalar_select 0, %s4, %s2
  $region1: #{tpu_custom_call.1} parent=0
    #allocation2 [shape = 'u8[8192]{0}', space=vmem, size = 0x2000, scoped, tag = 'input window, operand 0, single buffered']
    #allocation3 [shape = 's32[1]{0}', space=sflag, size = 0x4, scoped, tag = 'scoped memory for tpu_custom_call.1']
    #allocation4 [shape = 's32[1]{0}', space=sflag, size = 0x4, scoped, tag = 'scoped memory for tpu_custom_call.1']
    #allocation5 [shape = 'u8[8192]{0}', space=vmem, size = 0x2000, scoped, tag = 'output window, operand 0, single buffered']
    %6 = vsyncpa [#allocation3], 0
    %7 = vsyncpa [#allocation4], 0
    // Predicated region
    $region2: #{tpu_custom_call.1} parent=1 // pred_check
      _
    $region3: #{tpu_custom_call.1} parent=1 // pred_check_branch
      %9 = sbr.rel (0) target = $region5
    $region4: #{tpu_custom_call.1} parent=1 // pred_region
      %s11 = ssub.s32 256, 256
      %12 = vsyncadd [#allocation3], %s11
      %s14 = sshll.u32 [#allocation2], 4
      %s15 = int_to_ptr.vmem [resolvable:$true] %s14
      %17 = dma.hbm_to_vmem [thread:$0]  %s0, 256, %s15, [#allocation3]
    $region5: #{tpu_custom_call.1} parent=1 // pred_fallthru
      _
    // Predicated region
    $region6: #{tpu_custom_call.1} parent=1 // pred_check
      _
    $region7: #{tpu_custom_call.1} parent=1 // pred_check_branch
      %19 = sbr.rel (0) target = $region9
    $region8: #{tpu_custom_call.1} parent=1 // pred_region
      %20 = dma.done [#allocation3], 256
    $region9: #{tpu_custom_call.1} parent=1 // pred_fallthru
      _
    %v21 = vld [vmem:[#allocation2] sm:$0xff]
    %v22 = vld [vmem:[#allocation2 + $0x8] sm:$0xff]
    %23 = vst [vmem:[#allocation5] sm:$0xff] %v21
    %24 = vst [vmem:[#allocation5 + $0x8] sm:$0xff] %v22
    // Predicated region
    $region10: #{tpu_custom_call.1} parent=1 // pred_check
      _
    $region11: #{tpu_custom_call.1} parent=1 // pred_check_branch
      %26 = sbr.rel (0) target = $region13
    $region12: #{tpu_custom_call.1} parent=1 // pred_region
      %s28 = ssub.s32 256, 256
      %29 = vsyncadd [#allocation4], %s28
      %s31 = sshll.u32 [#allocation5], 4
      %s32 = int_to_ptr.vmem [resolvable:$true] %s31
      %34 = dma.vmem_to_hbm [thread:$0]  %s32, 256, %s1, [#allocation4]
    $region13: #{tpu_custom_call.1} parent=1 // pred_fallthru
      _
    // Predicated region
    $region14: #{tpu_custom_call.1} parent=1 // pred_check
      _
    $region15: #{tpu_custom_call.1} parent=1 // pred_check_branch
      %36 = sbr.rel (0) target = $region17
    $region16: #{tpu_custom_call.1} parent=1 // pred_region
      %37 = dma.done [#allocation4], 256
    $region17: #{tpu_custom_call.1} parent=1 // pred_fallthru
      _
    %38 = vsyncpa [#allocation3], 1
    %39 = vsyncpa [#allocation4], 1

</llo_original>
